<compile_context>
chip_gen: v7x
topology: tpu7x:2x2x1
jax: 0.10.0
libtpu: 0.0.40
codegen_flags: <defaults>
</compile_context>

<pallas_src>
import jax
import jax.numpy as jnp
from jax.experimental import pallas as pl
from jax.experimental.pallas import tpu as pltpu

INPUT_SIZE = 5
HIDDEN_SIZE = 5
AUG = INPUT_SIZE + HIDDEN_SIZE + 1   # columns: [W_ih | W_hh | b_ih+b_hh] -> 11


def rnn_step_kernel(x_ref, h_ref, w_ref, h_out_ref):
    """h_new[j] = tanh( b[j] + sum_i W_ih[j,i]*x[i] + sum_i W_hh[j,i]*h[i] ).

    x_ref:     (1, INPUT_SIZE)        input row
    h_ref:     (1, HIDDEN_SIZE)       previous hidden row
    w_ref:     (HIDDEN_SIZE, AUG)     packed weight, one (8,128) vreg:
                                        [:, :5]  = W_ih
                                        [:, 5:10]= W_hh
                                        [:, 10:] = b_ih + b_hh (column)
    h_out_ref: (HIDDEN_SIZE, 1)       new hidden state as a column

    VPU sublane-broadcast multiplies, a lane reduce on the XLU, and tanh on
    the EUP; accumulator is seeded with the bias column so there is no
    separate bias add and no augmented-input concat.
    """
    w = w_ref[...]                                             # (H, AUG)  1 vreg
    pre = w[:, AUG - 1:AUG]                                    # (H, 1)    bias seed
    pre = pre + jnp.sum(w[:, :INPUT_SIZE] * x_ref[...],
                        axis=-1, keepdims=True)                # VPU + lane reduce
    pre = pre + jnp.sum(w[:, INPUT_SIZE:INPUT_SIZE + HIDDEN_SIZE] * h_ref[...],
                        axis=-1, keepdims=True)                # VPU + lane reduce
    h_out_ref[...] = jnp.tanh(pre).astype(h_out_ref.dtype)     # EUP


def _full_spec(shape):
    # Whole-array VMEM tile (shapes are tiny); no grid.
    return pl.BlockSpec(shape, lambda: tuple(0 for _ in shape),
                        memory_space=pltpu.VMEM)


# Built once at import; 3 input refs (x row, h row, packed weight).
_rnn_step_call = pl.pallas_call(
    rnn_step_kernel,
    out_shape=jax.ShapeDtypeStruct((HIDDEN_SIZE, 1), jnp.float32),
    in_specs=[_full_spec((1, INPUT_SIZE)),
              _full_spec((1, HIDDEN_SIZE)),
              _full_spec((HIDDEN_SIZE, AUG))],
    out_specs=_full_spec((HIDDEN_SIZE, 1)),
)


@jax.jit
def _rnn_step_jit(w_aug, hidden, x):
    """One fused, jitted RNN step: reshapes + Pallas cell + output views."""
    x_row = jnp.reshape(x, (1, INPUT_SIZE)).astype(jnp.float32)       # x.view(1,1,5)
    h_row = jnp.reshape(hidden, (1, HIDDEN_SIZE)).astype(jnp.float32)
    h_col = _rnn_step_call(x_row, h_row, w_aug)                       # (H, 1)
    h_new = jnp.reshape(h_col, (1, HIDDEN_SIZE))
    hidden_out = h_new.reshape(1, 1, HIDDEN_SIZE)                     # final hidden
    out = h_new.reshape(-1, HIDDEN_SIZE)                              # out.view(-1,5)
    return hidden_out, out


class PallasRNNModel:
    """Mirrors the PyTorch Model: nn.RNN(5, 5, batch_first=True), one step."""

    def __init__(self, key):
        # PyTorch nn.RNN init: U(-1/sqrt(hidden), 1/sqrt(hidden))
        k = 1.0 / jnp.sqrt(jnp.float32(HIDDEN_SIZE))
        k1, k2, k3, k4 = jax.random.split(key, 4)
        # PyTorch stores W_ih: (hidden, input), W_hh: (hidden, hidden)
        self.w_ih = jax.random.uniform(k1, (HIDDEN_SIZE, INPUT_SIZE),
                                       jnp.float32, -k, k)
        self.w_hh = jax.random.uniform(k2, (HIDDEN_SIZE, HIDDEN_SIZE),
                                       jnp.float32, -k, k)
        self.b_ih = jax.random.uniform(k3, (HIDDEN_SIZE,), jnp.float32, -k, k)
        self.b_hh = jax.random.uniform(k4, (HIDDEN_SIZE,), jnp.float32, -k, k)

        # Lane-major packed weight, built ONCE, no transposes:
        #   row j = [ W_ih[j, :], W_hh[j, :], b_ih[j] + b_hh[j] ]   -> (5, 11)
        self.w_aug = jnp.concatenate(
            [self.w_ih, self.w_hh, (self.b_ih + self.b_hh)[:, None]],
            axis=1).astype(jnp.float32)

    def init_hidden(self):
        # (num_layers=1, batch=1, hidden=5)
        return jnp.zeros((1, 1, HIDDEN_SIZE), jnp.float32)

    def forward(self, hidden, x):
        return _rnn_step_jit(self.w_aug, hidden, x)


def _reference_forward(model, hidden, x):
    """Pure-JAX reference of the same RNN step (for sanity check)."""
    x_15 = jnp.reshape(x, (1, INPUT_SIZE))
    h_15 = jnp.reshape(hidden, (1, HIDDEN_SIZE))
    h_new = jnp.tanh(x_15 @ model.w_ih.T + model.b_ih
                     + h_15 @ model.w_hh.T + model.b_hh)
    return h_new.reshape(1, 1, HIDDEN_SIZE), h_new.reshape(-1, HIDDEN_SIZE)


if __name__ == "__main__":
    key = jax.random.PRNGKey(0)
    k_model, k_x = jax.random.split(key)

    model = PallasRNNModel(k_model)
    hidden0 = model.init_hidden()
    # Input: anything that views to (1, 1, 5) — use 5 elements.
    x = jax.random.normal(k_x, (1, 5), jnp.float32)

    hidden_out, out = model.forward(hidden0, x)
    hidden_out = jax.block_until_ready(hidden_out)
    out = jax.block_until_ready(out)

    # Cross-check against pure-JAX reference.
    ref_hidden, ref_out = _reference_forward(model, hidden0, x)
    assert hidden_out.shape == (1, 1, HIDDEN_SIZE)
    assert out.shape == (1, HIDDEN_SIZE)
    assert jnp.allclose(out, ref_out, atol=1e-5, rtol=1e-5)
    assert jnp.allclose(hidden_out, ref_hidden, atol=1e-5, rtol=1e-5)

    # Re-run to confirm the jitted path is stable/cached.
    hidden_out2, out2 = model.forward(hidden_out, x)
    jax.block_until_ready(out2)

    print("KERNEL_OK")
</pallas_src>

<mosaic_0001>
module attributes {stable_mosaic.version = 11 : i64} {
  func.func @rnn_step_kernel(%arg0: memref<1x5xf32, #tpu.memory_space<vmem>>, %arg1: memref<1x5xf32, #tpu.memory_space<vmem>>, %arg2: memref<5x11xf32, #tpu.memory_space<vmem>>, %arg3: memref<5x1xf32, #tpu.memory_space<vmem>>) attributes {dimension_semantics = [], scalar_prefetch = 0 : i64, scratch_operands = 0 : i64, tpu.core_type = #tpu.core_type<tc>} {
    %c0 = arith.constant 0 : index
    %c0_0 = arith.constant 0 : index
    %0 = vector.load %arg2[%c0, %c0_0] : memref<5x11xf32, #tpu.memory_space<vmem>>, vector<5x11xf32>
    %1 = vector.extract_strided_slice %0 {offsets = [0, 10], sizes = [5, 1], strides = [1, 1]} : vector<5x11xf32> to vector<5x1xf32>
    %2 = vector.extract_strided_slice %0 {offsets = [0, 0], sizes = [5, 5], strides = [1, 1]} : vector<5x11xf32> to vector<5x5xf32>
    %c0_1 = arith.constant 0 : index
    %c0_2 = arith.constant 0 : index
    %3 = vector.load %arg0[%c0_1, %c0_2] : memref<1x5xf32, #tpu.memory_space<vmem>>, vector<1x5xf32>
    %4 = vector.broadcast %3 : vector<1x5xf32> to vector<5x5xf32>
    %5 = arith.mulf %2, %4 : vector<5x5xf32>
    %cst = arith.constant dense<0.000000e+00> : vector<5xf32>
    %6 = vector.multi_reduction <add>, %5, %cst [1] : vector<5x5xf32> to vector<5xf32>
    %7 = vector.shape_cast %6 : vector<5xf32> to vector<5x1xf32>
    %8 = arith.addf %1, %7 : vector<5x1xf32>
    %9 = vector.extract_strided_slice %0 {offsets = [0, 5], sizes = [5, 5], strides = [1, 1]} : vector<5x11xf32> to vector<5x5xf32>
    %c0_3 = arith.constant 0 : index
    %c0_4 = arith.constant 0 : index
    %10 = vector.load %arg1[%c0_3, %c0_4] : memref<1x5xf32, #tpu.memory_space<vmem>>, vector<1x5xf32>
    %11 = vector.broadcast %10 : vector<1x5xf32> to vector<5x5xf32>
    %12 = arith.mulf %9, %11 : vector<5x5xf32>
    %cst_5 = arith.constant dense<0.000000e+00> : vector<5xf32>
    %13 = vector.multi_reduction <add>, %12, %cst_5 [1] : vector<5x5xf32> to vector<5xf32>
    %14 = vector.shape_cast %13 : vector<5xf32> to vector<5x1xf32>
    %15 = arith.addf %8, %14 : vector<5x1xf32>
    %16 = math.tanh %15 : vector<5x1xf32>
    %c0_6 = arith.constant 0 : index
    %c0_7 = arith.constant 0 : index
    %17 = vector.load %arg3[%c0_6, %c0_7] : memref<5x1xf32, #tpu.memory_space<vmem>>, vector<5x1xf32>
    tpu.vector_store %arg3[%c0_6, %c0_7], %16 {strides = array<i32>} : memref<5x1xf32, #tpu.memory_space<vmem>>, vector<5x1xf32>,
    return
  }
}

</mosaic_0001>

<llo_original>
// kernel: _rnn_step_jit.1
$region0: #{_rnn_step_jit.1}
  #allocation0 [shape = 'u32[]', space=smem, size = 0x4, offset = 0x4, fixed_abs, tag = 'smem constant byte address 0x4 - core index']
  #allocation1 [shape = 'u32[144,128]{1,0:T(1,128)}', space=vmem, size = 0x12000, scoped, tag = 'internal scratch']
  %s0 = inlined_call_operand.vmem [shape: f32[1,5], index: 0, kind: input, shape index: {}]
  %s1 = inlined_call_operand.vmem [shape: f32[1,5], index: 1, kind: input, shape index: {}]
  %s2 = inlined_call_operand.hbm [shape: f32[5,11], index: 2, kind: input, shape index: {}]
  %s3 = inlined_call_operand.vmem [shape: f32[5,1], index: 3, kind: output, shape index: {}]
  %s4 = sld [smem:[#allocation0]]
  $region26: #{_rnn_step_jit.1} parent=0
    _
  %s6 = ssub.s32 1, %s4
  %s7 = scalar_select 0, %s6, %s4
  $region1: #{_rnn_step_jit.1} parent=0
    #allocation2 [shape = 'u8[4096]{0}', space=vmem, size = 0x1000, scoped, tag = 'input window, operand 2, single buffered']
    #allocation3 [shape = 's32[1]{0}', space=sflag, size = 0x4, scoped, tag = 'scoped memory for _rnn_step_jit.1']
    %8 = vsyncpa [#allocation3], 0
    // Predicated region
    $region2: #{_rnn_step_jit.1} parent=1 // pred_check
      _
    $region3: #{_rnn_step_jit.1} parent=1 // pred_check_branch
      %10 = sbr.rel (0) target = $region5
    $region4: #{_rnn_step_jit.1} parent=1 // pred_region
      _
    $region5: #{_rnn_step_jit.1} parent=1 // pred_fallthru
      _
    // Predicated region
    $region6: #{_rnn_step_jit.1} parent=1 // pred_check
      _
    $region7: #{_rnn_step_jit.1} parent=1 // pred_check_branch
      %12 = sbr.rel (0) target = $region9
    $region8: #{_rnn_step_jit.1} parent=1 // pred_region
      _
    $region9: #{_rnn_step_jit.1} parent=1 // pred_fallthru
      _
    // Predicated region
    $region10: #{_rnn_step_jit.1} parent=1 // pred_check
      _
    $region11: #{_rnn_step_jit.1} parent=1 // pred_check_branch
      %14 = sbr.rel (0) target = $region13
    $region12: #{_rnn_step_jit.1} parent=1 // pred_region
      %s16 = ssub.s32 128, 128
      %17 = vsyncadd [#allocation3], %s16
      %s19 = sshll.u32 [#allocation2], 4
      %s20 = int_to_ptr.vmem [resolvable:$true] %s19
      %22 = dma.hbm_to_vmem [thread:$0]  %s2, 128, %s20, [#allocation3]
    $region13: #{_rnn_step_jit.1} parent=1 // pred_fallthru
      _
    // Predicated region
    $region14: #{_rnn_step_jit.1} parent=1 // pred_check
      _
    $region15: #{_rnn_step_jit.1} parent=1 // pred_check_branch
      %24 = sbr.rel (0) target = $region17
    $region16: #{_rnn_step_jit.1} parent=1 // pred_region
      %25 = dma.done [#allocation3], 128
    $region17: #{_rnn_step_jit.1} parent=1 // pred_fallthru
      _
    %v26 = vld [vmem:[#allocation2] sm:$0x1f]
    %v27 = vld [vmem:[%s0] sm:$0x1]
    %v29 = vlaneseq
    %v30 = vshrl.u32 %v29, 7
    %v31 = vsub.s32 0, %v30
    %v32 = vrot.slane %v27, %v31
    %v34 = vmul.f32 %v26, %v32
    %vm35 = vcmask 36864
    %v36 = vsel %vm35, %v34, 0.0
    %37 = vadd.xlane.f32.xlu0 %v36
    %v38 = vpop.xlane.xlu0 %37
    %v39 = vadd.f32 %v26, %v38
    %v40 = vld [vmem:[%s1] sm:$0x1]
    %v42 = vlaneseq
    %v43 = vshrl.u32 %v42, 7
    %v44 = vsub.s32 0, %v43
    %v45 = vrot.slane %v40, %v44
    %46 = vrot.lane.b32.xlu0 %v45, 5
    %v47 = vpop.permute.xlu0 %46
    %v49 = vmul.f32 %v26, %v47
    %51 = vrot.lane.b32.xlu0 %v49, 123
    %v52 = vpop.permute.xlu0 %51
    %v54 = vsel %vm35, %v52, 0.0
    %55 = vadd.xlane.f32.xlu0 %v54
    %v56 = vpop.xlane.xlu0 %55
    %v57 = vadd.f32 %v39, %v56
    %v58 = vtanh.pop %v57
    %60 = vrot.lane.b32.xlu0 %v58, 118
    %v61 = vpop.permute.xlu0 %60
    %vm63 = vcmask 4096
    %64 = vst.msk [vmem:[%s3] sm:$0x1f] %vm63, %v61
    // Predicated region
    $region18: #{_rnn_step_jit.1} parent=1 // pred_check
      _
    $region19: #{_rnn_step_jit.1} parent=1 // pred_check_branch
      %66 = sbr.rel (0) target = $region21
    $region20: #{_rnn_step_jit.1} parent=1 // pred_region
      _
    $region21: #{_rnn_step_jit.1} parent=1 // pred_fallthru
      _
    // Predicated region
    $region22: #{_rnn_step_jit.1} parent=1 // pred_check
      _
    $region23: #{_rnn_step_jit.1} parent=1 // pred_check_branch
      %68 = sbr.rel (0) target = $region25
    $region24: #{_rnn_step_jit.1} parent=1 // pred_region
      _
    $region25: #{_rnn_step_jit.1} parent=1 // pred_fallthru
      _
    %69 = vsyncpa [#allocation3], 1

</llo_original>
